<compile_context>
chip_gen: v7x
topology: tpu7x:2x2x1
jax: 0.10.0
libtpu: 0.0.40
codegen_flags: <defaults>
</compile_context>

<pallas_src>
import functools

import jax
import jax.numpy as jnp
from jax import lax
from jax.experimental import pallas as pl
from jax.experimental.pallas import tpu as pltpu

HIDDEN = 1024            # HuBERT-large hidden size (fc1 in_features)
D_HALF = HIDDEN // 2     # per-core lane half for the megacore split
FC1_OUT = 512
NUM_CLASSES = 10
OUT_PAD = 128            # lane-dense padded class dimension (multiple of 128)
BN_EPS = 1e-5


def _vmem_capacity_bytes():
    """Physical per-core VMEM; conservative fallback if the query fails."""
    try:
        info = pltpu.get_tpu_info()
        for name in ("vmem_capacity_bytes", "vmem_size_bytes", "vmem_bytes"):
            v = getattr(info, name, None)
            if v:
                return int(v)
    except Exception:
        pass
    return 64 << 20      # v7x per-TC VMEM (smallest of the three generations)


def _plan_t_tile(B, T):
    """Largest streamed T tile that fits an honest per-generation VMEM budget."""
    cap = _vmem_capacity_bytes()
    bytes_per_frame = B * D_HALF * 2                 # one bf16 frame row (per D-half)
    # VMEM residents besides the double-buffered h stream (per core):
    fixed = (2 * D_HALF * FC1_OUT * 2                # w1 half (bf16), double-buffered
             + B * D_HALF * 4                        # f32 accumulator scratch
             + 2 * B * FC1_OUT * 4)                  # output block (double-buffered)
    headroom = 4 << 20                               # compiler scratch / epilogue temps
    budget = int(cap * 0.5) - fixed - headroom       # stay well under physical VMEM
    budget = max(budget, 2 * bytes_per_frame * 16)
    tT = budget // (2 * bytes_per_frame)             # 2x: double-buffered stream
    if T <= max(tT, 16):
        return T                                     # single full-extent tile (legal)
    tT = min(tT, 4096, T)
    tT = max(16, (tT // 16) * 16)                    # bf16 sublane-packing friendly
    return tT


def pool_fc1_kernel(h_ref, w1_ref, zp_ref, acc_ref, *, true_t, t_tile):
    """Streamed time-sum of one D-half of h + partial fc1 on the last step."""
    t = pl.program_id(1)
    last = pl.num_programs(1) - 1

    @pl.when(t == 0)
    def _init():
        acc_ref[...] = jnp.zeros_like(acc_ref)

    rem = true_t % t_tile            # static: valid rows in the last (ragged) tile
    if rem == 0:
        # Every tile is full: bf16 -> f32 convert fused into the time reduce.
        acc_ref[...] += jnp.sum(h_ref[...], axis=1, dtype=jnp.float32)
    else:
        @pl.when(t != last)
        def _full():
            acc_ref[...] += jnp.sum(h_ref[...], axis=1, dtype=jnp.float32)

        @pl.when(t == last)
        def _ragged():
            # Mask the OOB tail of the last partial block to exact zeros.
            hv = h_ref[...]
            rows = lax.broadcasted_iota(jnp.int32, hv.shape, 1)
            hm = jnp.where(rows < rem, hv, jnp.zeros_like(hv))
            acc_ref[...] += jnp.sum(hm, axis=1, dtype=jnp.float32)

    @pl.when(t == last)
    def _epilogue():
        # Mean over the true T (T is input-dependent, so 1/T cannot be folded
        # into the weights at prepare time); bf16 operands into the MXU.
        pooled = (acc_ref[...] * (1.0 / true_t)).astype(jnp.bfloat16)
        zp_ref[0] = jnp.dot(pooled, w1_ref[...],
                            preferred_element_type=jnp.float32)


def head_combine_kernel(zp_ref, b1_ref, w2_ref, b2_ref, o_ref):
    """Combine per-half fc1 partials + BN-folded bias + ReLU + fc2 (padded)."""
    z = zp_ref[0] + zp_ref[1] + b1_ref[...]              # (B, 512) f32
    a = jnp.maximum(z, 0.0).astype(jnp.bfloat16)
    # Dropout(p=0.5): identity in inference mode.
    o_ref[...] = jnp.dot(a, w2_ref[...],
                         preferred_element_type=jnp.float32) + b2_ref[...]


def gtr_classifier_head(h, params, *, t_tile=None):
    """h: (B, T, 1024) hidden states (ideally bf16). Returns (B, 10) f32 logits."""
    B, T, D = h.shape
    assert D == HIDDEN
    if h.dtype != jnp.bfloat16:
        # Producers should emit bf16 directly (the HuBERT stub does); this is a
        # no-op on that path and only exists for generic callers.
        h = h.astype(jnp.bfloat16)

    tT = _plan_t_tile(B, T) if t_tile is None else min(t_tile, T)
    n_t = pl.cdiv(T, tT)

    kernel = functools.partial(pool_fc1_kernel, true_t=T, t_tile=tT)

    # Honest VMEM budget: double-buffered h stream + residents + headroom.
    cap = _vmem_capacity_bytes()
    h_block_bytes = B * tT * D_HALF * 2
    fixed = 2 * D_HALF * FC1_OUT * 2 + B * D_HALF * 4 + 2 * B * FC1_OUT * 4
    vmem_bytes = int(min(cap, max(2 * h_block_bytes + fixed + (4 << 20), 32 << 20)))

    grid_spec = pltpu.PrefetchScalarGridSpec(
        num_scalar_prefetch=0,
        # (lane-half of D [parallel -> one per v7x TensorCore], T tiles [reduction]).
        grid=(2, n_t),
        in_specs=[
            # Streamed activation tiles (bf16), one 512-lane half per core.
            pl.BlockSpec((B, tT, D_HALF), lambda d, t: (0, t, d)),
            # fc1 weight half (bf16): constant along the reduction axis.
            pl.BlockSpec((D_HALF, FC1_OUT), lambda d, t: (d, 0)),
        ],
        out_specs=pl.BlockSpec((1, B, FC1_OUT), lambda d, t: (d, 0, 0)),
        scratch_shapes=[pltpu.VMEM((B, D_HALF), jnp.float32)],
    )

    z_partial = pl.pallas_call(
        kernel,
        out_shape=jax.ShapeDtypeStruct((2, B, FC1_OUT), jnp.float32),
        grid_spec=grid_spec,
        compiler_params=pltpu.CompilerParams(
            dimension_semantics=("parallel", "arbitrary"),
            vmem_limit_bytes=vmem_bytes),
    )(h, params["w1f"])

    # Tiny combine kernel: everything fits in VMEM as whole-array blocks.
    logits_pad = pl.pallas_call(
        head_combine_kernel,
        out_shape=jax.ShapeDtypeStruct((B, OUT_PAD), jnp.float32),
    )(z_partial, params["b1f"], params["w2p"], params["b2p"])

    return logits_pad[:, :NUM_CLASSES]


def init_params(key):
    """Raw (PyTorch-like) parameters matching the module's shapes."""
    k1, k2, k3, k4, k5, k6 = jax.random.split(key, 6)
    w1 = jax.random.normal(k1, (HIDDEN, FC1_OUT), jnp.float32) * 0.02       # fc1.weight.T
    b1 = jax.random.normal(k2, (1, FC1_OUT), jnp.float32) * 0.02            # fc1.bias
    w2 = jax.random.normal(k3, (FC1_OUT, NUM_CLASSES), jnp.float32) * 0.02  # fc2.weight.T
    b2 = jax.random.normal(k4, (1, NUM_CLASSES), jnp.float32) * 0.02        # fc2.bias
    bn_gamma = jnp.ones((1, FC1_OUT), jnp.float32) + 0.1 * jax.random.normal(k5, (1, FC1_OUT))
    bn_beta = 0.1 * jax.random.normal(k6, (1, FC1_OUT), jnp.float32)
    bn_mean = jnp.zeros((1, FC1_OUT), jnp.float32)
    bn_var = jnp.ones((1, FC1_OUT), jnp.float32)
    return dict(w1=w1, b1=b1, w2=w2, b2=b2,
                bn_gamma=bn_gamma, bn_beta=bn_beta,
                bn_mean=bn_mean, bn_var=bn_var)


def prepare_params(raw):
    """One-time prep: fold BN(eval) into fc1, lane-pad fc2 to 128, bf16 weights."""
    scale = raw["bn_gamma"] * lax.rsqrt(raw["bn_var"] + BN_EPS)              # (1, 512)
    w1f = (raw["w1"] * scale).astype(jnp.bfloat16)                           # (1024, 512)
    b1f = (raw["b1"] - raw["bn_mean"]) * scale + raw["bn_beta"]              # (1, 512) f32
    w2p = (jnp.zeros((FC1_OUT, OUT_PAD), jnp.float32)
           .at[:, :NUM_CLASSES].set(raw["w2"]).astype(jnp.bfloat16))
    b2p = jnp.zeros((1, OUT_PAD), jnp.float32).at[:, :NUM_CLASSES].set(raw["b2"])
    return dict(w1f=w1f, b1f=b1f, w2p=w2p, b2p=b2p)


def hubert_stub(x, key):
    """Stand-in for HubertModel: frame the waveform, project to 1024, emit bf16.

    x: (B, 1, samples) raw audio (pre-squeeze(1) layout of the PyTorch module).
    """
    # TODO(synk): HubertModel.from_pretrained has no Pallas equivalent without
    # a checkpoint; stubbed with a deterministic per-frame linear projection.
    B, _, samples = x.shape
    frame = 64
    T = samples // frame
    frames = x.squeeze(1)[:, :T * frame].reshape(B, T, frame)
    proj = jax.random.normal(key, (frame, HIDDEN), jnp.float32) * 0.1
    # Emit bf16 directly so the Pallas head never needs a standalone cast pass.
    return jnp.einsum("btf,fd->btd", frames, proj).astype(jnp.bfloat16)


def gtr_classifier_forward(x, params, stub_key):
    h = hubert_stub(x, stub_key)             # (B, T, 1024) bf16
    return gtr_classifier_head(h, params)    # (B, NUM_CLASSES) f32


if __name__ == "__main__":
    key = jax.random.PRNGKey(0)
    k_x, k_params, k_stub, k_x2 = jax.random.split(key, 4)

    raw = init_params(k_params)
    params = prepare_params(raw)

    def reference_head(h):
        """Pure-JAX f32 reference with UNfolded / UNpadded parameters."""
        hf = h.astype(jnp.float32)
        pooled = hf.mean(axis=1)
        z = pooled @ raw["w1"] + raw["b1"]
        zn = (z - raw["bn_mean"]) * lax.rsqrt(raw["bn_var"] + BN_EPS)
        zn = zn * raw["bn_gamma"] + raw["bn_beta"]
        return jnp.maximum(zn, 0.0) @ raw["w2"] + raw["b2"]

    # Case 1: end-to-end small forward (waveform -> stub encoder -> Pallas head).
    B, T, frame = 4, 8, 64
    x = jax.random.normal(k_x, (B, 1, T * frame), jnp.float32)
    logits = gtr_classifier_forward(x, params, k_stub)
    jax.block_until_ready(logits)
    ref = reference_head(hubert_stub(x, k_stub))
    assert logits.shape == (B, NUM_CLASSES)
    err1 = jnp.max(jnp.abs(logits - ref))
    assert jnp.allclose(logits, ref, atol=1e-2, rtol=1e-2), f"case1 max abs err {err1}"

    # Case 2: multi-tile stream with a ragged tail (T % t_tile != 0) exercising
    # the in-kernel masking path (forced small tile).
    B2, T2 = 2, 200
    h2 = jax.random.normal(k_x2, (B2, T2, HIDDEN), jnp.float32).astype(jnp.bfloat16)
    logits2 = gtr_classifier_head(h2, params, t_tile=64)
    jax.block_until_ready(logits2)
    ref2 = reference_head(h2)
    assert logits2.shape == (B2, NUM_CLASSES)
    err2 = jnp.max(jnp.abs(logits2 - ref2))
    assert jnp.allclose(logits2, ref2, atol=1e-2, rtol=1e-2), f"case2 max abs err {err2}"

    print("KERNEL_OK")
</pallas_src>

<mosaic_0001>
module attributes {stable_mosaic.version = 11 : i64} {
  func.func @pool_fc1_kernel(%arg0: i32, %arg1: i32, %arg2: memref<4x8x512xbf16, #tpu.memory_space<vmem>>, %arg3: memref<512x512xbf16, #tpu.memory_space<vmem>>, %arg4: memref<1x4x512xf32, #tpu.memory_space<vmem>>, %arg5: memref<4x512xf32, #tpu.memory_space<vmem>>) attributes {dimension_semantics = [#tpu.dimension_semantics<parallel>, #tpu.dimension_semantics<arbitrary>], iteration_bounds = array<i64: 2, 1>, scalar_prefetch = 0 : i64, scratch_operands = 1 : i64, tpu.core_type = #tpu.core_type<tc>, window_params = [{transform_indices = @transform_0, window_bounds = array<i64: 4, 8, 512>}, {transform_indices = @transform_1, window_bounds = array<i64: 512, 512>}, {transform_indices = @transform_2, window_bounds = array<i64: 1, 4, 512>}]} {
    %c0_i32 = arith.constant 0 : i32
    %0 = arith.cmpi eq, %arg1, %c0_i32 : i32
    %1 = arith.extui %0 : i1 to i32
    %c0_i32_0 = arith.constant 0 : i32
    %2 = arith.cmpi ne, %1, %c0_i32_0 : i32
    scf.if %2 {
      %cst_9 = arith.constant 0.000000e+00 : f32
      %12 = vector.broadcast %cst_9 : f32 to vector<4x512xf32>
      %c0_10 = arith.constant 0 : index
      %c0_11 = arith.constant 0 : index
      %13 = vector.load %arg5[%c0_10, %c0_11] : memref<4x512xf32, #tpu.memory_space<vmem>>, vector<4x512xf32>
      tpu.vector_store %arg5[%c0_10, %c0_11], %12 {strides = array<i32>} : memref<4x512xf32, #tpu.memory_space<vmem>>, vector<4x512xf32>,
    } else {
    }
    %c0 = arith.constant 0 : index
    %c0_1 = arith.constant 0 : index
    %3 = vector.load %arg5[%c0, %c0_1] : memref<4x512xf32, #tpu.memory_space<vmem>>, vector<4x512xf32>
    %c0_2 = arith.constant 0 : index
    %c0_3 = arith.constant 0 : index
    %c0_4 = arith.constant 0 : index
    %4 = vector.load %arg2[%c0_2, %c0_3, %c0_4] : memref<4x8x512xbf16, #tpu.memory_space<vmem>>, vector<4x8x512xbf16>
    %5 = arith.extf %4 : vector<4x8x512xbf16> to vector<4x8x512xf32>
    %cst = arith.constant dense<0.000000e+00> : vector<4x512xf32>
    %6 = vector.multi_reduction <add>, %5, %cst [1] : vector<4x8x512xf32> to vector<4x512xf32>
    %7 = arith.addf %3, %6 : vector<4x512xf32>
    %c0_5 = arith.constant 0 : index
    %c0_6 = arith.constant 0 : index
    %8 = vector.load %arg5[%c0_5, %c0_6] : memref<4x512xf32, #tpu.memory_space<vmem>>, vector<4x512xf32>
    tpu.vector_store %arg5[%c0_5, %c0_6], %7 {strides = array<i32>} : memref<4x512xf32, #tpu.memory_space<vmem>>, vector<4x512xf32>,
    %c0_i32_7 = arith.constant 0 : i32
    %9 = arith.cmpi eq, %arg1, %c0_i32_7 : i32
    %10 = arith.extui %9 : i1 to i32
    %c0_i32_8 = arith.constant 0 : i32
    %11 = arith.cmpi ne, %10, %c0_i32_8 : i32
    scf.if %11 {
      %c0_9 = arith.constant 0 : index
      %c0_10 = arith.constant 0 : index
      %12 = vector.load %arg5[%c0_9, %c0_10] : memref<4x512xf32, #tpu.memory_space<vmem>>, vector<4x512xf32>
      %cst_11 = arith.constant 1.250000e-01 : f32
      %13 = vector.broadcast %cst_11 : f32 to vector<4x512xf32>
      %14 = arith.mulf %12, %13 : vector<4x512xf32>
      %15 = arith.truncf %14 : vector<4x512xf32> to vector<4x512xbf16>
      %c0_12 = arith.constant 0 : index
      %c0_13 = arith.constant 0 : index
      %16 = vector.load %arg3[%c0_12, %c0_13] : memref<512x512xbf16, #tpu.memory_space<vmem>>, vector<512x512xbf16>
      %cst_14 = arith.constant dense<0.000000e+00> : vector<4x512xf32>
      %17 = tpu.matmul %15, %16, %cst_14 {dimension_numbers = #tpu.dot_dimension_numbers<[1], [0], [0], [1], [0, 0, 1, 1], [], []>} : vector<4x512xbf16>, vector<512x512xbf16>, vector<4x512xf32> -> vector<4x512xf32>
      %c0_15 = arith.constant 0 : index
      %c0_16 = arith.constant 0 : index
      %c0_17 = arith.constant 0 : index
      %18 = vector.load %arg4[%c0_15, %c0_16, %c0_17] : memref<1x4x512xf32, #tpu.memory_space<vmem>>, vector<1x4x512xf32>
      %19 = vector.shape_cast %18 : vector<1x4x512xf32> to vector<4x512xf32>
      %20 = vector.shape_cast %17 : vector<4x512xf32> to vector<1x4x512xf32>
      tpu.vector_store %arg4[%c0_15, %c0_16, %c0_17], %20 {strides = array<i32>} : memref<1x4x512xf32, #tpu.memory_space<vmem>>, vector<1x4x512xf32>,
    } else {
    }
    return
  }
  func.func @transform_0(%arg0: i32, %arg1: i32) -> (i32, i32, i32) {
    %c0_i32 = arith.constant 0 : i32
    %c0_i32_0 = arith.constant 0 : i32
    return %c0_i32, %arg1, %arg0 : i32, i32, i32
  }
  func.func @transform_1(%arg0: i32, %arg1: i32) -> (i32, i32) {
    %c0_i32 = arith.constant 0 : i32
    %c0_i32_0 = arith.constant 0 : i32
    return %arg0, %c0_i32 : i32, i32
  }
  func.func @transform_2(%arg0: i32, %arg1: i32) -> (i32, i32, i32) {
    %c0_i32 = arith.constant 0 : i32
    %c0_i32_0 = arith.constant 0 : i32
    %c0_i32_1 = arith.constant 0 : i32
    return %arg0, %c0_i32, %c0_i32_0 : i32, i32, i32
  }
}

</mosaic_0001>

<llo_original>
// kernel: tpu_custom_call.1
$region0: #{tpu_custom_call.1}
  #allocation0 [shape = 'u32[]', space=smem, size = 0x4, offset = 0x4, fixed_abs, tag = 'smem constant byte address 0x4 - core index']
  #allocation1 [shape = 'u32[144,128]{1,0:T(1,128)}', space=vmem, size = 0x12000, scoped, tag = 'internal scratch']
  #allocation2 [shape = 'f32[4,512]{1,0:T(4,128)}', space=vmem, size = 0x2000, scoped, tag = 'scratch operand']
  %s0 = inlined_call_operand.hbm [shape: bf16[4,8,1024], index: 0, kind: input, shape index: {}]
  %s1 = inlined_call_operand.hbm [shape: bf16[1024,512], index: 1, kind: input, shape index: {}]
  %s2 = inlined_call_operand.hbm [shape: f32[2,4,512], index: 2, kind: output, shape index: {}]
  %s3 = sld [smem:[#allocation0]]
  $region57: #{tpu_custom_call.1} parent=0
    _
  %s5 = ssub.s32 1, %s3
  %s6 = scalar_select 0, %s5, %s3
  $region1: #{tpu_custom_call.1} parent=0
    #allocation3 [shape = 'u8[65536]{0}', space=vmem, size = 0x10000, scoped, tag = 'input window, operand 0']
    #allocation4 [shape = 's32[2]{0}', space=sflag, size = 0x8, scoped, tag = 'scoped memory for tpu_custom_call.1']
    #allocation5 [shape = 's32[2]{0}', space=sflag, size = 0x8, scoped, tag = 'scoped memory for tpu_custom_call.1']
    #allocation6 [shape = 'u8[1048576]{0}', space=vmem, size = 0x100000, scoped, tag = 'input window, operand 1']
    #allocation7 [shape = 's32[2]{0}', space=sflag, size = 0x8, scoped, tag = 'scoped memory for tpu_custom_call.1']
    #allocation8 [shape = 'u8[16384]{0}', space=vmem, size = 0x4000, scoped, tag = 'output window, operand 0']
    %7 = vsyncpa [#allocation4], 0
    %s8 = scalar_lea.sflag [#allocation4], 1
    %9 = vsyncpa %s8, 0
    %10 = vsyncpa [#allocation7], 0
    %s11 = scalar_lea.sflag [#allocation7], 1
    %12 = vsyncpa %s11, 0
    %13 = vsyncpa [#allocation5], 0
    %s14 = scalar_lea.sflag [#allocation5], 1
    %15 = vsyncpa %s14, 0
    loop: start=0, step=1, limit=4
    $region2: #{tpu_custom_call.1} parent=1 // loop_pre_header
      _
    $region3: #{tpu_custom_call.1} parent=1 // loop_header
      %s17 = sphi 0, %s21
      %p18 = scmp.ge.s32.totalorder %s17, 4
      %s24 = sphi 0, %s36
      %s25 = sphi 0, %s32
      %s26 = sphi 0, %s24
      %s27 = sphi 0, %s25
      %s28 = sphi 0, %s26
      %s29 = sphi 0, %s27
      %s41 = sphi 0, %s43
      %s44 = sphi 0, %s41
      %s45 = sphi 0, %s44
      %s61 = sphi 0, %s45
      %s67 = sphi 0, %s69
      %s70 = sphi 0, %s67
      %s71 = sphi 0, %s70
      %s87 = sphi 0, %s71
      %s93 = sphi 0, %s95
      %s96 = sphi 0, %s93
      %s97 = sphi 0, %s96
      %s113 = sphi 0, %s97
    $region4: #{tpu_custom_call.1} parent=1 // loop_header_branch
      %20 = sbr.rel (%p18) target = $region8
    $region5: #{tpu_custom_call.1} parent=1 // loop_body
      %s22 = ssub.s32 %s17, 1
      %s23 = ssub.s32 %s17, 2
      %s30 = sadd.s32 1, %s25
      %p31 = scmp.ge.s32.totalorder %s30, 1
      %s32 = scalar_select %p31, 0, %s30
      %s33 = sadd.s32 1, %s24
      %s34 = scalar_select %p31, %s33, %s24
      %p35 = scmp.ge.s32.totalorder %s34, 2
      %s36 = scalar_select %p35, 0, %s34
      %s37 = ssub.s32 %s25, %s32
      %s38 = ssub.s32 %s24, %s36
      %s39 = sor.u32 %s37, %s38
      %p40 = scmp.eq.s32.totalorder %s39, 0
      %s42 = sadd.s32 %s41, 1
      %s43 = scalar_select %p40, %s41, %s42
      %p46 = pneg %p40
      %p47 = scmp.eq.s32.totalorder %s17, 1
      %p48 = por %p46, %p47
      %p49 = scmp.ne.s32.totalorder %s41, %s44
      %p50 = scmp.eq.s32.totalorder %s17, 0
      %p51 = por %p49, %p50
      %p52 = scmp.ne.s32.totalorder %s41, %s44
      %p53 = scmp.eq.s32.totalorder %s22, 1
      %p54 = por %p52, %p53
      %p55 = scmp.ne.s32.totalorder %s44, %s45
      %p56 = scmp.eq.s32.totalorder %s22, 0
      %p57 = por %p55, %p56
      %p58 = scmp.ne.s32.totalorder %s44, %s45
      %p59 = scmp.eq.s32.totalorder %s23, 1
      %p60 = por %p58, %p59
      %p62 = scmp.ne.s32.totalorder %s45, %s61
      %p63 = scmp.eq.s32.totalorder %s23, 0
      %p64 = por %p62, %p63
      %s65 = ssub.s32 %s24, %s36
      %p66 = scmp.eq.s32.totalorder %s65, 0
      %s68 = sadd.s32 %s67, 1
      %s69 = scalar_select %p66, %s67, %s68
      %p72 = pneg %p66
      %p73 = scmp.eq.s32.totalorder %s17, 1
      %p74 = por %p72, %p73
      %p75 = scmp.ne.s32.totalorder %s67, %s70
      %p76 = scmp.eq.s32.totalorder %s17, 0
      %p77 = por %p75, %p76
      %p78 = scmp.ne.s32.totalorder %s67, %s70
      %p79 = scmp.eq.s32.totalorder %s22, 1
      %p80 = por %p78, %p79
      %p81 = scmp.ne.s32.totalorder %s70, %s71
      %p82 = scmp.eq.s32.totalorder %s22, 0
      %p83 = por %p81, %p82
      %p84 = scmp.ne.s32.totalorder %s70, %s71
      %p85 = scmp.eq.s32.totalorder %s23, 1
      %p86 = por %p84, %p85
      %p88 = scmp.ne.s32.totalorder %s71, %s87
      %p89 = scmp.eq.s32.totalorder %s23, 0
      %p90 = por %p88, %p89
      %s91 = ssub.s32 %s24, %s36
      %p92 = scmp.eq.s32.totalorder %s91, 0
      %s94 = sadd.s32 %s93, 1
      %s95 = scalar_select %p92, %s93, %s94
      %p98 = pneg %p92
      %p99 = scmp.eq.s32.totalorder %s17, 1
      %p100 = por %p98, %p99
      %p101 = scmp.ne.s32.totalorder %s93, %s96
      %p102 = scmp.eq.s32.totalorder %s17, 0
      %p103 = por %p101, %p102
      %p104 = scmp.ne.s32.totalorder %s93, %s96
      %p105 = scmp.eq.s32.totalorder %s22, 1
      %p106 = por %p104, %p105
      %p107 = scmp.ne.s32.totalorder %s96, %s97
      %p108 = scmp.eq.s32.totalorder %s22, 0
      %p109 = por %p107, %p108
      %p110 = scmp.ne.s32.totalorder %s96, %s97
      %p111 = scmp.eq.s32.totalorder %s23, 1
      %p112 = por %p110, %p111
      %p114 = scmp.ne.s32.totalorder %s97, %s113
      %p115 = scmp.eq.s32.totalorder %s23, 0
      %p116 = por %p114, %p115
      %p117 = scmp.le.s32.totalorder 1, %s17
      %p118 = scmp.lt.s32.totalorder %s17, 3
      %p119 = pnand %p117, %p118
      %p120 = pneg %p119
      // Predicated region
      $region9: #{tpu_custom_call.1} parent=5 // pred_check
        _
      $region10: #{tpu_custom_call.1} parent=5 // pred_check_branch
        %122 = sbr.rel (%p119) target = $region12
      $region11: #{tpu_custom_call.1} parent=5 // pred_region
        %s123 = ssub.s32 %s17, 1
      $region12: #{tpu_custom_call.1} parent=5 // pred_fallthru
        _
      %p124 = scmp.lt.s32.totalorder %s17, 2
      // Predicated region
      $region13: #{tpu_custom_call.1} parent=5 // pred_check
        %p125 = pneg %p124
      $region14: #{tpu_custom_call.1} parent=5 // pred_check_branch
        %127 = sbr.rel (%p125) target = $region16
      $region15: #{tpu_custom_call.1} parent=5 // pred_region
        // Predicated region
        $region17: #{tpu_custom_call.1} parent=15 // pred_check
          %p128 = pneg %p51
        $region18: #{tpu_custom_call.1} parent=15 // pred_check_branch
          %130 = sbr.rel (%p128) target = $region20
        $region19: #{tpu_custom_call.1} parent=15 // pred_region
          %s131 = sand.u32 %s41, 1
          %s132 = scalar_lea.sflag [#allocation4], %s131
          %s133 = sand.u32 %s41, 1
          %s134 = smul.addr %s133, 64
          %s135 = scalar_lea.vmem [#allocation3], %s134
          %s136 = smul.u32 4, %s24
          %s138 = ssub.s32 1024, 1024
          %139 = vsyncadd %s132, %s138
          %s140 = smul.addr %s25, 8
          %s141 = sadd.s32 %s136, %s140
          %s142 = smul.addr %s141, 64
          %s143 = scalar_lea.hbm %s0, %s142
          %s144 = sshll.u32 %s135, 4
          %s145 = int_to_ptr.vmem [resolvable:$true] %s144
          %150 = dma.hbm_to_vmem [thread:$0]  %s143, 1024, %s145, %s132, 512, 256, 16
        $region20: #{tpu_custom_call.1} parent=15 // pred_fallthru
          _
        // Predicated region
        $region21: #{tpu_custom_call.1} parent=15 // pred_check
          %p151 = pneg %p77
        $region22: #{tpu_custom_call.1} parent=15 // pred_check_branch
          %153 = sbr.rel (%p151) target = $region24
        $region23: #{tpu_custom_call.1} parent=15 // pred_region
          %s154 = sand.u32 %s67, 1
          %s155 = scalar_lea.sflag [#allocation7], %s154
          %s156 = sand.u32 %s67, 1
          %s157 = smul.addr %s156, 1024
          %s158 = scalar_lea.vmem [#allocation6], %s157
          %s159 = smul.u32 64, %s24
          %s161 = ssub.s32 16384, 16384
          %162 = vsyncadd %s155, %s161
          %s163 = smul.addr %s159, 4
          %s164 = smul.addr %s163, 64
          %s165 = scalar_lea.hbm %s1, %s164
          %s166 = sshll.u32 %s158, 4
          %s167 = int_to_ptr.vmem [resolvable:$true] %s166
          %172 = dma.hbm_to_vmem [thread:$0]  %s165, 16384, %s167, %s155, 256, 256, 16
        $region24: #{tpu_custom_call.1} parent=15 // pred_fallthru
          _
      $region16: #{tpu_custom_call.1} parent=5 // pred_fallthru
        _
      %p173 = scmp.le.s32.totalorder 1, %s17
      %p174 = scmp.lt.s32.totalorder %s17, 3
      %p175 = pnand %p173, %p174
      %p176 = pneg %p175
      // Predicated region
      $region25: #{tpu_custom_call.1} parent=5 // pred_check
        _
      $region26: #{tpu_custom_call.1} parent=5 // pred_check_branch
        %178 = sbr.rel (%p175) target = $region28
      $region27: #{tpu_custom_call.1} parent=5 // pred_region
        %s179 = ssub.s32 %s17, 1
        %s180 = sand.u32 %s44, 1
        %s181 = scalar_lea.sflag [#allocation4], %s180
        %s182 = sand.u32 %s44, 1
        %s183 = smul.addr %s182, 64
        %s184 = scalar_lea.vmem [#allocation3], %s183
        // Predicated region
        $region29: #{tpu_custom_call.1} parent=27 // pred_check
          %p185 = pneg %p57
        $region30: #{tpu_custom_call.1} parent=27 // pred_check_branch
          %187 = sbr.rel (%p185) target = $region32
        $region31: #{tpu_custom_call.1} parent=27 // pred_region
          %188 = dma.done %s181, 1024
        $region32: #{tpu_custom_call.1} parent=27 // pred_fallthru
          _
        %s189 = sand.u32 %s70, 1
        %s190 = scalar_lea.sflag [#allocation7], %s189
        %s191 = sand.u32 %s70, 1
        %s192 = smul.addr %s191, 1024
        %s193 = scalar_lea.vmem [#allocation6], %s192
        // Predicated region
        $region33: #{tpu_custom_call.1} parent=27 // pred_check
          %p194 = pneg %p83
        $region34: #{tpu_custom_call.1} parent=27 // pred_check_branch
          %196 = sbr.rel (%p194) target = $region36
        $region35: #{tpu_custom_call.1} parent=27 // pred_region
          %197 = dma.done %s190, 16384
        $region36: #{tpu_custom_call.1} parent=27 // pred_fallthru
          _
        %s198 = sand.u32 %s44, 1
        %s199 = scalar_lea.sflag [#allocation4], %s198
        %s200 = sand.u32 %s44, 1
        %s201 = smul.addr %s200, 64
        %s202 = scalar_lea.vmem [#allocation3], %s201
        %p203 = pneg %p57
        %p204 = pneg %p54
        %s205 = sand.u32 %s70, 1
        %s206 = scalar_lea.sflag [#allocation7], %s205
        %s207 = sand.u32 %s70, 1
        %s208 = smul.addr %s207, 1024
        %s209 = scalar_lea.vmem [#allocation6], %s208
        %p210 = pneg %p83
        %p211 = pneg %p80
        %p212 = pneg %p109
        %p213 = pneg %p106
        %s214 = sand.u32 %s96, 1
        %s215 = scalar_lea.sflag [#allocation5], %s214
        %s216 = sand.u32 %s96, 1
        %s217 = smul.addr %s216, 16
        %s218 = scalar_lea.vmem [#allocation8], %s217
        %s219 = smul.u32 4, %s26
        %s220 = smul.u32 64, %s26
        %p221 = scmp.eq.s32.totalorder %s27, 0
        // Predicated region
        $region37: #{tpu_custom_call.1} parent=27 // pred_check
          %p222 = pneg %p221
        $region38: #{tpu_custom_call.1} parent=27 // pred_check_branch
          %224 = sbr.rel (%p222) target = $region40
        $region39: #{tpu_custom_call.1} parent=27 // pred_region
          %225 = vst [vmem:[#allocation2] sm:$0xff] 0.0
          %226 = vst [vmem:[#allocation2 + $0x8] sm:$0xff] 0.0
        $region40: #{tpu_custom_call.1} parent=27 // pred_fallthru
          _
        %v227 = vld [vmem:[#allocation2] sm:$0xff]
        %v228 = vld [vmem:[#allocation2 + $0x8] sm:$0xff]
        %v229 = vld [vmem:[%s184] sm:$0xff]
        %v230 = vld [vmem:[%s184 + $0x8] sm:$0xff]
        %v231 = vld [vmem:[%s184 + $0x10] sm:$0xff]
        %v232 = vld [vmem:[%s184 + $0x18] sm:$0xff]
        %v233 = vld [vmem:[%s184 + $0x20] sm:$0xff]
        %v234 = vld [vmem:[%s184 + $0x28] sm:$0xff]
        %v235 = vld [vmem:[%s184 + $0x30] sm:$0xff]
        %v236 = vld [vmem:[%s184 + $0x38] sm:$0xff]
        %v237 = vunpack.c.l.bf16 %v229
        %v238 = vunpack.c.h.bf16 %v229
        %v239 = vunpack.c.l.bf16 %v230
        %v240 = vunpack.c.h.bf16 %v230
        %v241 = vunpack.c.l.bf16 %v231
        %v242 = vunpack.c.h.bf16 %v231
        %v243 = vunpack.c.l.bf16 %v232
        %v244 = vunpack.c.h.bf16 %v232
        %v245 = vunpack.c.l.bf16 %v233
        %v246 = vunpack.c.h.bf16 %v233
        %v247 = vunpack.c.l.bf16 %v234
        %v248 = vunpack.c.h.bf16 %v234
        %v249 = vunpack.c.l.bf16 %v235
        %v250 = vunpack.c.h.bf16 %v235
        %v251 = vunpack.c.l.bf16 %v236
        %v252 = vunpack.c.h.bf16 %v236
        %v253 = vrot.slane %v237, 4
        %v254 = vadd.f32 %v237, %v253
        %v255 = vrot.slane %v254, 2
        %v256 = vadd.f32 %v254, %v255
        %v257 = vrot.slane %v256, 1
        %v258 = vadd.f32 %v256, %v257
        %v259 = vrot.slane %v238, 4
        %v260 = vadd.f32 %v238, %v259
        %v261 = vrot.slane %v260, 2
        %v262 = vadd.f32 %v260, %v261
        %v263 = vrot.slane %v262, 1
        %v264 = vadd.f32 %v262, %v263
        %v265 = vrot.slane %v239, 4
        %v266 = vadd.f32 %v239, %v265
        %v267 = vrot.slane %v266, 2
        %v268 = vadd.f32 %v266, %v267
        %v269 = vrot.slane %v268, 1
        %v270 = vadd.f32 %v268, %v269
        %v271 = vrot.slane %v240, 4
        %v272 = vadd.f32 %v240, %v271
        %v273 = vrot.slane %v272, 2
        %v274 = vadd.f32 %v272, %v273
        %v275 = vrot.slane %v274, 1
        %v276 = vadd.f32 %v274, %v275
        %v277 = vrot.slane %v241, 4
        %v278 = vadd.f32 %v241, %v277
        %v279 = vrot.slane %v278, 2
        %v280 = vadd.f32 %v278, %v279
        %v281 = vrot.slane %v280, 1
        %v282 = vadd.f32 %v280, %v281
        %v283 = vrot.slane %v242, 4
        %v284 = vadd.f32 %v242, %v283
        %v285 = vrot.slane %v284, 2
        %v286 = vadd.f32 %v284, %v285
        %v287 = vrot.slane %v286, 1
        %v288 = vadd.f32 %v286, %v287
        %v289 = vrot.slane %v243, 4
        %v290 = vadd.f32 %v243, %v289
        %v291 = vrot.slane %v290, 2
        %v292 = vadd.f32 %v290, %v291
        %v293 = vrot.slane %v292, 1
        %v294 = vadd.f32 %v292, %v293
        %v295 = vrot.slane %v244, 4
        %v296 = vadd.f32 %v244, %v295
        %v297 = vrot.slane %v296, 2
        %v298 = vadd.f32 %v296, %v297
        %v299 = vrot.slane %v298, 1
        %v300 = vadd.f32 %v298, %v299
        %v301 = vrot.slane %v245, 4
        %v302 = vadd.f32 %v245, %v301
        %v303 = vrot.slane %v302, 2
        %v304 = vadd.f32 %v302, %v303
        %v305 = vrot.slane %v304, 1
        %v306 = vadd.f32 %v304, %v305
        %v307 = vrot.slane %v246, 4
        %v308 = vadd.f32 %v246, %v307
        %v309 = vrot.slane %v308, 2
        %v310 = vadd.f32 %v308, %v309
        %v311 = vrot.slane %v310, 1
        %v312 = vadd.f32 %v310, %v311
        %v313 = vrot.slane %v247, 4
        %v314 = vadd.f32 %v247, %v313
        %v315 = vrot.slane %v314, 2
        %v316 = vadd.f32 %v314, %v315
        %v317 = vrot.slane %v316, 1
        %v318 = vadd.f32 %v316, %v317
        %v319 = vrot.slane %v248, 4
        %v320 = vadd.f32 %v248, %v319
        %v321 = vrot.slane %v320, 2
        %v322 = vadd.f32 %v320, %v321
        %v323 = vrot.slane %v322, 1
        %v324 = vadd.f32 %v322, %v323
        %v325 = vrot.slane %v249, 4
        %v326 = vadd.f32 %v249, %v325
        %v327 = vrot.slane %v326, 2
        %v328 = vadd.f32 %v326, %v327
        %v329 = vrot.slane %v328, 1
        %v330 = vadd.f32 %v328, %v329
        %v331 = vrot.slane %v250, 4
        %v332 = vadd.f32 %v250, %v331
        %v333 = vrot.slane %v332, 2
        %v334 = vadd.f32 %v332, %v333
        %v335 = vrot.slane %v334, 1
        %v336 = vadd.f32 %v334, %v335
        %v337 = vrot.slane %v251, 4
        %v338 = vadd.f32 %v251, %v337
        %v339 = vrot.slane %v338, 2
        %v340 = vadd.f32 %v338, %v339
        %v341 = vrot.slane %v340, 1
        %v342 = vadd.f32 %v340, %v341
        %v343 = vrot.slane %v252, 4
        %v344 = vadd.f32 %v252, %v343
        %v345 = vrot.slane %v344, 2
        %v346 = vadd.f32 %v344, %v345
        %v347 = vrot.slane %v346, 1
        %v348 = vadd.f32 %v346, %v347
        %v365 = vcombine.low %v258, %v264
        %v366 = vcombine.low %v270, %v276
        %v367 = vcombine.low %v282, %v288
        %v368 = vcombine.low %v294, %v300
        %v369 = vcombine.low %v306, %v312
        %v370 = vcombine.low %v318, %v324
        %v371 = vcombine.low %v330, %v336
        %v372 = vcombine.low %v342, %v348
        %v373 = vrot.slane %v367, 7
        %vm374 = vcmask 1041409
        %v375 = vsel %vm374, %v373, %v365
        %vm376 = vcmask 1045509
        %v377 = vsel %vm376, %v373, %v375
        %v378 = vrot.slane %v369, 6
        %vm379 = vcmask 1042434
        %v380 = vsel %vm379, %v378, %v377
        %vm381 = vcmask 1046534
        %v382 = vsel %vm381, %v378, %v380
        %v383 = vrot.slane %v371, 5
        %vm384 = vcmask 1043459
        %v385 = vsel %vm384, %v383, %v382
        %vm386 = vcmask 1047559
        %v387 = vsel %vm386, %v383, %v385
        %v388 = vrot.slane %v368, 7
        %v389 = vsel %vm374, %v388, %v366
        %v390 = vsel %vm376, %v388, %v389
        %v391 = vrot.slane %v370, 6
        %v392 = vsel %vm379, %v391, %v390
        %v393 = vsel %vm381, %v391, %v392
        %v394 = vrot.slane %v372, 5
        %v395 = vsel %vm384, %v394, %v393
        %v396 = vsel %vm386, %v394, %v395
        %v399 = vadd.f32 %v227, %v387
        %v400 = vadd.f32 %v228, %v396
        %401 = vst [vmem:[#allocation2] sm:$0xff] %v399
        %402 = vst [vmem:[#allocation2 + $0x8] sm:$0xff] %v400
        // Predicated region
        $region41: #{tpu_custom_call.1} parent=27 // pred_check
          %p403 = pneg %p221
        $region42: #{tpu_custom_call.1} parent=27 // pred_check_branch
          %405 = sbr.rel (%p403) target = $region44
        $region43: #{tpu_custom_call.1} parent=27 // pred_region
          %v406 = vld [vmem:[#allocation2] sm:$0xff]
          %v407 = vld [vmem:[#allocation2 + $0x8] sm:$0xff]
          %v408 = vmul.f32 %v406, 0.125
          %v409 = vmul.f32 %v407, 0.125
          %v412 = vcombine.high %v408, %v408
          %v413 = vcombine.high %v409, %v409
          %v416 = vpack.c.bf16 %v408, %v408
          %v417 = vpack.c.bf16 %v412, %v412
          %v418 = vpack.c.bf16 %v409, %v409
          %v419 = vpack.c.bf16 %v413, %v413
          %v420 = vld [vmem:[%s193] sm:$0xff]
          %v421 = vld [vmem:[%s193 + $0x8] sm:$0xff]
          %v422 = vld [vmem:[%s193 + $0x10] sm:$0xff]
          %v423 = vld [vmem:[%s193 + $0x18] sm:$0xff]
          %v424 = vld [vmem:[%s193 + $0x20] sm:$0xff]
          %v425 = vld [vmem:[%s193 + $0x28] sm:$0xff]
          %v426 = vld [vmem:[%s193 + $0x30] sm:$0xff]
          %v427 = vld [vmem:[%s193 + $0x38] sm:$0xff]
          %v428 = vld [vmem:[%s193 + $0x40] sm:$0xff]
          %v429 = vld [vmem:[%s193 + $0x48] sm:$0xff]
          %v430 = vld [vmem:[%s193 + $0x50] sm:$0xff]
          %v431 = vld [vmem:[%s193 + $0x58] sm:$0xff]
          %v432 = vld [vmem:[%s193 + $0x60] sm:$0xff]
          %v433 = vld [vmem:[%s193 + $0x68] sm:$0xff]
          %v434 = vld [vmem:[%s193 + $0x70] sm:$0xff]
          %v435 = vld [vmem:[%s193 + $0x78] sm:$0xff]
          %v436 = vld [vmem:[%s193 + $0x80] sm:$0xff]
          %v437 = vld [vmem:[%s193 + $0x88] sm:$0xff]
          %v438 = vld [vmem:[%s193 + $0x90] sm:$0xff]
          %v439 = vld [vmem:[%s193 + $0x98] sm:$0xff]
          %v440 = vld [vmem:[%s193 + $0xa0] sm:$0xff]
          %v441 = vld [vmem:[%s193 + $0xa8] sm:$0xff]
          %v442 = vld [vmem:[%s193 + $0xb0] sm:$0xff]
          %v443 = vld [vmem:[%s193 + $0xb8] sm:$0xff]
          %v444 = vld [vmem:[%s193 + $0xc0] sm:$0xff]
          %v445 = vld [vmem:[%s193 + $0xc8] sm:$0xff]
          %v446 = vld [vmem:[%s193 + $0xd0] sm:$0xff]
          %v447 = vld [vmem:[%s193 + $0xd8] sm:$0xff]
          %v448 = vld [vmem:[%s193 + $0xe0] sm:$0xff]
          %v449 = vld [vmem:[%s193 + $0xe8] sm:$0xff]
          %v450 = vld [vmem:[%s193 + $0xf0] sm:$0xff]
          %v451 = vld [vmem:[%s193 + $0xf8] sm:$0xff]
          %v452 = vld [vmem:[%s193 + $0x100] sm:$0xff]
          %v453 = vld [vmem:[%s193 + $0x108] sm:$0xff]
          %v454 = vld [vmem:[%s193 + $0x110] sm:$0xff]
          %v455 = vld [vmem:[%s193 + $0x118] sm:$0xff]
          %v456 = vld [vmem:[%s193 + $0x120] sm:$0xff]
          %v457 = vld [vmem:[%s193 + $0x128] sm:$0xff]
          %v458 = vld [vmem:[%s193 + $0x130] sm:$0xff]
          %v459 = vld [vmem:[%s193 + $0x138] sm:$0xff]
          %v460 = vld [vmem:[%s193 + $0x140] sm:$0xff]
          %v461 = vld [vmem:[%s193 + $0x148] sm:$0xff]
          %v462 = vld [vmem:[%s193 + $0x150] sm:$0xff]
          %v463 = vld [vmem:[%s193 + $0x158] sm:$0xff]
          %v464 = vld [vmem:[%s193 + $0x160] sm:$0xff]
          %v465 = vld [vmem:[%s193 + $0x168] sm:$0xff]
          %v466 = vld [vmem:[%s193 + $0x170] sm:$0xff]
          %v467 = vld [vmem:[%s193 + $0x178] sm:$0xff]
          %v468 = vld [vmem:[%s193 + $0x180] sm:$0xff]
          %v469 = vld [vmem:[%s193 + $0x188] sm:$0xff]
          %v470 = vld [vmem:[%s193 + $0x190] sm:$0xff]
          %v471 = vld [vmem:[%s193 + $0x198] sm:$0xff]
          %v472 = vld [vmem:[%s193 + $0x1a0] sm:$0xff]
          %v473 = vld [vmem:[%s193 + $0x1a8] sm:$0xff]
          %v474 = vld [vmem:[%s193 + $0x1b0] sm:$0xff]
          %v475 = vld [vmem:[%s193 + $0x1b8] sm:$0xff]
          %v476 = vld [vmem:[%s193 + $0x1c0] sm:$0xff]
          %v477 = vld [vmem:[%s193 + $0x1c8] sm:$0xff]
          %v478 = vld [vmem:[%s193 + $0x1d0] sm:$0xff]
          %v479 = vld [vmem:[%s193 + $0x1d8] sm:$0xff]
          %v480 = vld [vmem:[%s193 + $0x1e0] sm:$0xff]
          %v481 = vld [vmem:[%s193 + $0x1e8] sm:$0xff]
          %v482 = vld [vmem:[%s193 + $0x1f0] sm:$0xff]
          %v483 = vld [vmem:[%s193 + $0x1f8] sm:$0xff]
          %v484 = vld [vmem:[%s193 + $0x200] sm:$0xff]
          %v485 = vld [vmem:[%s193 + $0x208] sm:$0xff]
          %v486 = vld [vmem:[%s193 + $0x210] sm:$0xff]
          %v487 = vld [vmem:[%s193 + $0x218] sm:$0xff]
          %v488 = vld [vmem:[%s193 + $0x220] sm:$0xff]
          %v489 = vld [vmem:[%s193 + $0x228] sm:$0xff]
          %v490 = vld [vmem:[%s193 + $0x230] sm:$0xff]
          %v491 = vld [vmem:[%s193 + $0x238] sm:$0xff]
          %v492 = vld [vmem:[%s193 + $0x240] sm:$0xff]
          %v493 = vld [vmem:[%s193 + $0x248] sm:$0xff]
          %v494 = vld [vmem:[%s193 + $0x250] sm:$0xff]
          %v495 = vld [vmem:[%s193 + $0x258] sm:$0xff]
          %v496 = vld [vmem:[%s193 + $0x260] sm:$0xff]
          %v497 = vld [vmem:[%s193 + $0x268] sm:$0xff]
          %v498 = vld [vmem:[%s193 + $0x270] sm:$0xff]
          %v499 = vld [vmem:[%s193 + $0x278] sm:$0xff]
          %v500 = vld [vmem:[%s193 + $0x280] sm:$0xff]
          %v501 = vld [vmem:[%s193 + $0x288] sm:$0xff]
          %v502 = vld [vmem:[%s193 + $0x290] sm:$0xff]
          %v503 = vld [vmem:[%s193 + $0x298] sm:$0xff]
          %v504 = vld [vmem:[%s193 + $0x2a0] sm:$0xff]
          %v505 = vld [vmem:[%s193 + $0x2a8] sm:$0xff]
          %v506 = vld [vmem:[%s193 + $0x2b0] sm:$0xff]
          %v507 = vld [vmem:[%s193 + $0x2b8] sm:$0xff]
          %v508 = vld [vmem:[%s193 + $0x2c0] sm:$0xff]
          %v509 = vld [vmem:[%s193 + $0x2c8] sm:$0xff]
          %v510 = vld [vmem:[%s193 + $0x2d0] sm:$0xff]
          %v511 = vld [vmem:[%s193 + $0x2d8] sm:$0xff]
          %v512 = vld [vmem:[%s193 + $0x2e0] sm:$0xff]
          %v513 = vld [vmem:[%s193 + $0x2e8] sm:$0xff]
          %v514 = vld [vmem:[%s193 + $0x2f0] sm:$0xff]
          %v515 = vld [vmem:[%s193 + $0x2f8] sm:$0xff]
          %v516 = vld [vmem:[%s193 + $0x300] sm:$0xff]
          %v517 = vld [vmem:[%s193 + $0x308] sm:$0xff]
          %v518 = vld [vmem:[%s193 + $0x310] sm:$0xff]
          %v519 = vld [vmem:[%s193 + $0x318] sm:$0xff]
          %v520 = vld [vmem:[%s193 + $0x320] sm:$0xff]
          %v521 = vld [vmem:[%s193 + $0x328] sm:$0xff]
          %v522 = vld [vmem:[%s193 + $0x330] sm:$0xff]
          %v523 = vld [vmem:[%s193 + $0x338] sm:$0xff]
          %v524 = vld [vmem:[%s193 + $0x340] sm:$0xff]
          %v525 = vld [vmem:[%s193 + $0x348] sm:$0xff]
          %v526 = vld [vmem:[%s193 + $0x350] sm:$0xff]
          %v527 = vld [vmem:[%s193 + $0x358] sm:$0xff]
          %v528 = vld [vmem:[%s193 + $0x360] sm:$0xff]
          %v529 = vld [vmem:[%s193 + $0x368] sm:$0xff]
          %v530 = vld [vmem:[%s193 + $0x370] sm:$0xff]
          %v531 = vld [vmem:[%s193 + $0x378] sm:$0xff]
          %v532 = vld [vmem:[%s193 + $0x380] sm:$0xff]
          %v533 = vld [vmem:[%s193 + $0x388] sm:$0xff]
          %v534 = vld [vmem:[%s193 + $0x390] sm:$0xff]
          %v535 = vld [vmem:[%s193 + $0x398] sm:$0xff]
          %v536 = vld [vmem:[%s193 + $0x3a0] sm:$0xff]
          %v537 = vld [vmem:[%s193 + $0x3a8] sm:$0xff]
          %v538 = vld [vmem:[%s193 + $0x3b0] sm:$0xff]
          %v539 = vld [vmem:[%s193 + $0x3b8] sm:$0xff]
          %v540 = vld [vmem:[%s193 + $0x3c0] sm:$0xff]
          %v541 = vld [vmem:[%s193 + $0x3c8] sm:$0xff]
          %v542 = vld [vmem:[%s193 + $0x3d0] sm:$0xff]
          %v543 = vld [vmem:[%s193 + $0x3d8] sm:$0xff]
          %v544 = vld [vmem:[%s193 + $0x3e0] sm:$0xff]
          %v545 = vld [vmem:[%s193 + $0x3e8] sm:$0xff]
          %v546 = vld [vmem:[%s193 + $0x3f0] sm:$0xff]
          %v547 = vld [vmem:[%s193 + $0x3f8] sm:$0xff]
          %v676 = vunpack.c.l.b16 %v420
          %v677 = vunpack.c.h.b16 %v420
          %v678 = vunpack.c.l.b16 %v421
          %v679 = vunpack.c.h.b16 %v421
          %v680 = vunpack.c.l.b16 %v422
          %v681 = vunpack.c.h.b16 %v422
          %v682 = vunpack.c.l.b16 %v423
          %v683 = vunpack.c.h.b16 %v423
          %v684 = vunpack.c.l.b16 %v424
          %v685 = vunpack.c.h.b16 %v424
          %v686 = vunpack.c.l.b16 %v425
          %v687 = vunpack.c.h.b16 %v425
          %v688 = vunpack.c.l.b16 %v426
          %v689 = vunpack.c.h.b16 %v426
          %v690 = vunpack.c.l.b16 %v427
          %v691 = vunpack.c.h.b16 %v427
          %v692 = vunpack.c.l.b16 %v428
          %v693 = vunpack.c.h.b16 %v428
          %v694 = vunpack.c.l.b16 %v429
          %v695 = vunpack.c.h.b16 %v429
          %v696 = vunpack.c.l.b16 %v430
          %v697 = vunpack.c.h.b16 %v430
          %v698 = vunpack.c.l.b16 %v431
          %v699 = vunpack.c.h.b16 %v431
          %v700 = vunpack.c.l.b16 %v432
          %v701 = vunpack.c.h.b16 %v432
          %v702 = vunpack.c.l.b16 %v433
          %v703 = vunpack.c.h.b16 %v433
          %v704 = vunpack.c.l.b16 %v434
          %v705 = vunpack.c.h.b16 %v434
          %v706 = vunpack.c.l.b16 %v435
          %v707 = vunpack.c.h.b16 %v435
          %v708 = vunpack.c.l.b16 %v436
          %v709 = vunpack.c.h.b16 %v436
          %v710 = vunpack.c.l.b16 %v437
          %v711 = vunpack.c.h.b16 %v437
          %v712 = vunpack.c.l.b16 %v438
          %v713 = vunpack.c.h.b16 %v438
          %v714 = vunpack.c.l.b16 %v439
          %v715 = vunpack.c.h.b16 %v439
          %v716 = vunpack.c.l.b16 %v440
          %v717 = vunpack.c.h.b16 %v440
          %v718 = vunpack.c.l.b16 %v441
          %v719 = vunpack.c.h.b16 %v441
          %v720 = vunpack.c.l.b16 %v442
          %v721 = vunpack.c.h.b16 %v442
          %v722 = vunpack.c.l.b16 %v443
          %v723 = vunpack.c.h.b16 %v443
          %v724 = vunpack.c.l.b16 %v444
          %v725 = vunpack.c.h.b16 %v444
          %v726 = vunpack.c.l.b16 %v445
          %v727 = vunpack.c.h.b16 %v445
          %v728 = vunpack.c.l.b16 %v446
          %v729 = vunpack.c.h.b16 %v446
          %v730 = vunpack.c.l.b16 %v447
          %v731 = vunpack.c.h.b16 %v447
          %v732 = vunpack.c.l.b16 %v448
          %v733 = vunpack.c.h.b16 %v448
          %v734 = vunpack.c.l.b16 %v449
          %v735 = vunpack.c.h.b16 %v449
          %v736 = vunpack.c.l.b16 %v450
          %v737 = vunpack.c.h.b16 %v450
          %v738 = vunpack.c.l.b16 %v451
          %v739 = vunpack.c.h.b16 %v451
          %v740 = vunpack.c.l.b16 %v452
          %v741 = vunpack.c.h.b16 %v452
          %v742 = vunpack.c.l.b16 %v453
          %v743 = vunpack.c.h.b16 %v453
          %v744 = vunpack.c.l.b16 %v454
          %v745 = vunpack.c.h.b16 %v454
          %v746 = vunpack.c.l.b16 %v455
          %v747 = vunpack.c.h.b16 %v455
          %v748 = vunpack.c.l.b16 %v456
          %v749 = vunpack.c.h.b16 %v456
          %v750 = vunpack.c.l.b16 %v457
          %v751 = vunpack.c.h.b16 %v457
          %v752 = vunpack.c.l.b16 %v458
          %v753 = vunpack.c.h.b16 %v458
          %v754 = vunpack.c.l.b16 %v459
          %v755 = vunpack.c.h.b16 %v459
          %v756 = vunpack.c.l.b16 %v460
          %v757 = vunpack.c.h.b16 %v460
          %v758 = vunpack.c.l.b16 %v461
          %v759 = vunpack.c.h.b16 %v461
          %v760 = vunpack.c.l.b16 %v462
          %v761 = vunpack.c.h.b16 %v462
          %v762 = vunpack.c.l.b16 %v463
          %v763 = vunpack.c.h.b16 %v463
          %v764 = vunpack.c.l.b16 %v464
          %v765 = vunpack.c.h.b16 %v464
          %v766 = vunpack.c.l.b16 %v465
          %v767 = vunpack.c.h.b16 %v465
          %v768 = vunpack.c.l.b16 %v466
          %v769 = vunpack.c.h.b16 %v466
          %v770 = vunpack.c.l.b16 %v467
          %v771 = vunpack.c.h.b16 %v467
          %v772 = vunpack.c.l.b16 %v468
          %v773 = vunpack.c.h.b16 %v468
          %v774 = vunpack.c.l.b16 %v469
          %v775 = vunpack.c.h.b16 %v469
          %v776 = vunpack.c.l.b16 %v470
          %v777 = vunpack.c.h.b16 %v470
          %v778 = vunpack.c.l.b16 %v471
          %v779 = vunpack.c.h.b16 %v471
          %v780 = vunpack.c.l.b16 %v472
          %v781 = vunpack.c.h.b16 %v472
          %v782 = vunpack.c.l.b16 %v473
          %v783 = vunpack.c.h.b16 %v473
          %v784 = vunpack.c.l.b16 %v474
          %v785 = vunpack.c.h.b16 %v474
          %v786 = vunpack.c.l.b16 %v475
          %v787 = vunpack.c.h.b16 %v475
          %v788 = vunpack.c.l.b16 %v476
          %v789 = vunpack.c.h.b16 %v476
          %v790 = vunpack.c.l.b16 %v477
          %v791 = vunpack.c.h.b16 %v477
          %v792 = vunpack.c.l.b16 %v478
          %v793 = vunpack.c.h.b16 %v478
          %v794 = vunpack.c.l.b16 %v479
          %v795 = vunpack.c.h.b16 %v479
          %v796 = vunpack.c.l.b16 %v480
          %v797 = vunpack.c.h.b16 %v480
          %v798 = vunpack.c.l.b16 %v481
          %v799 = vunpack.c.h.b16 %v481
          %v800 = vunpack.c.l.b16 %v482
          %v801 = vunpack.c.h.b16 %v482
          %v802 = vunpack.c.l.b16 %v483
          %v803 = vunpack.c.h.b16 %v483
          %v804 = vunpack.c.l.b16 %v484
          %v805 = vunpack.c.h.b16 %v484
          %v806 = vunpack.c.l.b16 %v485
          %v807 = vunpack.c.h.b16 %v485
          %v808 = vunpack.c.l.b16 %v486
          %v809 = vunpack.c.h.b16 %v486
          %v810 = vunpack.c.l.b16 %v487
          %v811 = vunpack.c.h.b16 %v487
          %v812 = vunpack.c.l.b16 %v488
          %v813 = vunpack.c.h.b16 %v488
          %v814 = vunpack.c.l.b16 %v489
          %v815 = vunpack.c.h.b16 %v489
          %v816 = vunpack.c.l.b16 %v490
          %v817 = vunpack.c.h.b16 %v490
          %v818 = vunpack.c.l.b16 %v491
          %v819 = vunpack.c.h.b16 %v491
          %v820 = vunpack.c.l.b16 %v492
          %v821 = vunpack.c.h.b16 %v492
          %v822 = vunpack.c.l.b16 %v493
          %v823 = vunpack.c.h.b16 %v493
          %v824 = vunpack.c.l.b16 %v494
          %v825 = vunpack.c.h.b16 %v494
          %v826 = vunpack.c.l.b16 %v495
          %v827 = vunpack.c.h.b16 %v495
          %v828 = vunpack.c.l.b16 %v496
          %v829 = vunpack.c.h.b16 %v496
          %v830 = vunpack.c.l.b16 %v497
          %v831 = vunpack.c.h.b16 %v497
          %v832 = vunpack.c.l.b16 %v498
          %v833 = vunpack.c.h.b16 %v498
          %v834 = vunpack.c.l.b16 %v499
          %v835 = vunpack.c.h.b16 %v499
          %v836 = vunpack.c.l.b16 %v500
          %v837 = vunpack.c.h.b16 %v500
          %v838 = vunpack.c.l.b16 %v501
          %v839 = vunpack.c.h.b16 %v501
          %v840 = vunpack.c.l.b16 %v502
          %v841 = vunpack.c.h.b16 %v502
          %v842 = vunpack.c.l.b16 %v503
          %v843 = vunpack.c.h.b16 %v503
          %v844 = vunpack.c.l.b16 %v504
          %v845 = vunpack.c.h.b16 %v504
          %v846 = vunpack.c.l.b16 %v505
          %v847 = vunpack.c.h.b16 %v505
          %v848 = vunpack.c.l.b16 %v506
          %v849 = vunpack.c.h.b16 %v506
          %v850 = vunpack.c.l.b16 %v507
          %v851 = vunpack.c.h.b16 %v507
          %v852 = vunpack.c.l.b16 %v508
          %v853 = vunpack.c.h.b16 %v508
          %v854 = vunpack.c.l.b16 %v509
          %v855 = vunpack.c.h.b16 %v509
          %v856 = vunpack.c.l.b16 %v510
          %v857 = vunpack.c.h.b16 %v510
          %v858 = vunpack.c.l.b16 %v511
          %v859 = vunpack.c.h.b16 %v511
          %v860 = vunpack.c.l.b16 %v512
          %v861 = vunpack.c.h.b16 %v512
          %v862 = vunpack.c.l.b16 %v513
          %v863 = vunpack.c.h.b16 %v513
          %v864 = vunpack.c.l.b16 %v514
          %v865 = vunpack.c.h.b16 %v514
          %v866 = vunpack.c.l.b16 %v515
          %v867 = vunpack.c.h.b16 %v515
          %v868 = vunpack.c.l.b16 %v516
          %v869 = vunpack.c.h.b16 %v516
          %v870 = vunpack.c.l.b16 %v517
          %v871 = vunpack.c.h.b16 %v517
          %v872 = vunpack.c.l.b16 %v518
          %v873 = vunpack.c.h.b16 %v518
          %v874 = vunpack.c.l.b16 %v519
          %v875 = vunpack.c.h.b16 %v519
          %v876 = vunpack.c.l.b16 %v520
          %v877 = vunpack.c.h.b16 %v520
          %v878 = vunpack.c.l.b16 %v521
          %v879 = vunpack.c.h.b16 %v521
          %v880 = vunpack.c.l.b16 %v522
          %v881 = vunpack.c.h.b16 %v522
          %v882 = vunpack.c.l.b16 %v523
          %v883 = vunpack.c.h.b16 %v523
          %v884 = vunpack.c.l.b16 %v524
          %v885 = vunpack.c.h.b16 %v524
          %v886 = vunpack.c.l.b16 %v525
          %v887 = vunpack.c.h.b16 %v525
          %v888 = vunpack.c.l.b16 %v526
          %v889 = vunpack.c.h.b16 %v526
          %v890 = vunpack.c.l.b16 %v527
          %v891 = vunpack.c.h.b16 %v527
          %v892 = vunpack.c.l.b16 %v528
          %v893 = vunpack.c.h.b16 %v528
          %v894 = vunpack.c.l.b16 %v529
          %v895 = vunpack.c.h.b16 %v529
          %v896 = vunpack.c.l.b16 %v530
          %v897 = vunpack.c.h.b16 %v530
          %v898 = vunpack.c.l.b16 %v531
          %v899 = vunpack.c.h.b16 %v531
          %v900 = vunpack.c.l.b16 %v532
          %v901 = vunpack.c.h.b16 %v532
          %v902 = vunpack.c.l.b16 %v533
          %v903 = vunpack.c.h.b16 %v533
          %v904 = vunpack.c.l.b16 %v534
          %v905 = vunpack.c.h.b16 %v534
          %v906 = vunpack.c.l.b16 %v535
          %v907 = vunpack.c.h.b16 %v535
          %v908 = vunpack.c.l.b16 %v536
          %v909 = vunpack.c.h.b16 %v536
          %v910 = vunpack.c.l.b16 %v537
          %v911 = vunpack.c.h.b16 %v537
          %v912 = vunpack.c.l.b16 %v538
          %v913 = vunpack.c.h.b16 %v538
          %v914 = vunpack.c.l.b16 %v539
          %v915 = vunpack.c.h.b16 %v539
          %v916 = vunpack.c.l.b16 %v540
          %v917 = vunpack.c.h.b16 %v540
          %v918 = vunpack.c.l.b16 %v541
          %v919 = vunpack.c.h.b16 %v541
          %v920 = vunpack.c.l.b16 %v542
          %v921 = vunpack.c.h.b16 %v542
          %v922 = vunpack.c.l.b16 %v543
          %v923 = vunpack.c.h.b16 %v543
          %v924 = vunpack.c.l.b16 %v544
          %v925 = vunpack.c.h.b16 %v544
          %v926 = vunpack.c.l.b16 %v545
          %v927 = vunpack.c.h.b16 %v545
          %v928 = vunpack.c.l.b16 %v546
          %v929 = vunpack.c.h.b16 %v546
          %v930 = vunpack.c.l.b16 %v547
          %v931 = vunpack.c.h.b16 %v547
          %v932 = vpack.c.b16 %v680, %v676
          %v933 = vpack.c.b16 %v681, %v677
          %v934 = vpack.c.b16 %v682, %v678
          %v935 = vpack.c.b16 %v683, %v679
          %v936 = vpack.c.b16 %v688, %v684
          %v937 = vpack.c.b16 %v689, %v685
          %v938 = vpack.c.b16 %v690, %v686
          %v939 = vpack.c.b16 %v691, %v687
          %v940 = vpack.c.b16 %v696, %v692
          %v941 = vpack.c.b16 %v697, %v693
          %v942 = vpack.c.b16 %v698, %v694
          %v943 = vpack.c.b16 %v699, %v695
          %v944 = vpack.c.b16 %v704, %v700
          %v945 = vpack.c.b16 %v705, %v701
          %v946 = vpack.c.b16 %v706, %v702
          %v947 = vpack.c.b16 %v707, %v703
          %v948 = vpack.c.b16 %v712, %v708
          %v949 = vpack.c.b16 %v713, %v709
          %v950 = vpack.c.b16 %v714, %v710
          %v951 = vpack.c.b16 %v715, %v711
          %v952 = vpack.c.b16 %v720, %v716
          %v953 = vpack.c.b16 %v721, %v717
          %v954 = vpack.c.b16 %v722, %v718
          %v955 = vpack.c.b16 %v723, %v719
          %v956 = vpack.c.b16 %v728, %v724
          %v957 = vpack.c.b16 %v729, %v725
          %v958 = vpack.c.b16 %v730, %v726
          %v959 = vpack.c.b16 %v731, %v727
          %v960 = vpack.c.b16 %v736, %v732
          %v961 = vpack.c.b16 %v737, %v733
          %v962 = vpack.c.b16 %v738, %v734
          %v963 = vpack.c.b16 %v739, %v735
          %v964 = vpack.c.b16 %v744, %v740
          %v965 = vpack.c.b16 %v745, %v741
          %v966 = vpack.c.b16 %v746, %v742
          %v967 = vpack.c.b16 %v747, %v743
          %v968 = vpack.c.b16 %v752, %v748
          %v969 = vpack.c.b16 %v753, %v749
          %v970 = vpack.c.b16 %v754, %v750
          %v971 = vpack.c.b16 %v755, %v751
          %v972 = vpack.c.b16 %v760, %v756
          %v973 = vpack.c.b16 %v761, %v757
          %v974 = vpack.c.b16 %v762, %v758
          %v975 = vpack.c.b16 %v763, %v759
          %v976 = vpack.c.b16 %v768, %v764
          %v977 = vpack.c.b16 %v769, %v765
          %v978 = vpack.c.b16 %v770, %v766
          %v979 = vpack.c.b16 %v771, %v767
          %v980 = vpack.c.b16 %v776, %v772
          %v981 = vpack.c.b16 %v777, %v773
          %v982 = vpack.c.b16 %v778, %v774
          %v983 = vpack.c.b16 %v779, %v775
          %v984 = vpack.c.b16 %v784, %v780
          %v985 = vpack.c.b16 %v785, %v781
          %v986 = vpack.c.b16 %v786, %v782
          %v987 = vpack.c.b16 %v787, %v783
          %v988 = vpack.c.b16 %v792, %v788
          %v989 = vpack.c.b16 %v793, %v789
          %v990 = vpack.c.b16 %v794, %v790
          %v991 = vpack.c.b16 %v795, %v791
          %v992 = vpack.c.b16 %v800, %v796
          %v993 = vpack.c.b16 %v801, %v797
          %v994 = vpack.c.b16 %v802, %v798
          %v995 = vpack.c.b16 %v803, %v799
          %v996 = vpack.c.b16 %v808, %v804
          %v997 = vpack.c.b16 %v809, %v805
          %v998 = vpack.c.b16 %v810, %v806
          %v999 = vpack.c.b16 %v811, %v807
          %v1000 = vpack.c.b16 %v816, %v812
          %v1001 = vpack.c.b16 %v817, %v813
          %v1002 = vpack.c.b16 %v818, %v814
          %v1003 = vpack.c.b16 %v819, %v815
          %v1004 = vpack.c.b16 %v824, %v820
          %v1005 = vpack.c.b16 %v825, %v821
          %v1006 = vpack.c.b16 %v826, %v822
          %v1007 = vpack.c.b16 %v827, %v823
          %v1008 = vpack.c.b16 %v832, %v828
          %v1009 = vpack.c.b16 %v833, %v829
          %v1010 = vpack.c.b16 %v834, %v830
          %v1011 = vpack.c.b16 %v835, %v831
          %v1012 = vpack.c.b16 %v840, %v836
          %v1013 = vpack.c.b16 %v841, %v837
          %v1014 = vpack.c.b16 %v842, %v838
          %v1015 = vpack.c.b16 %v843, %v839
          %v1016 = vpack.c.b16 %v848, %v844
          %v1017 = vpack.c.b16 %v849, %v845
          %v1018 = vpack.c.b16 %v850, %v846
          %v1019 = vpack.c.b16 %v851, %v847
          %v1020 = vpack.c.b16 %v856, %v852
          %v1021 = vpack.c.b16 %v857, %v853
          %v1022 = vpack.c.b16 %v858, %v854
          %v1023 = vpack.c.b16 %v859, %v855
          %v1024 = vpack.c.b16 %v864, %v860
          %v1025 = vpack.c.b16 %v865, %v861
          %v1026 = vpack.c.b16 %v866, %v862
          %v1027 = vpack.c.b16 %v867, %v863
          %v1028 = vpack.c.b16 %v872, %v868
          %v1029 = vpack.c.b16 %v873, %v869
          %v1030 = vpack.c.b16 %v874, %v870
          %v1031 = vpack.c.b16 %v875, %v871
          %v1032 = vpack.c.b16 %v880, %v876
          %v1033 = vpack.c.b16 %v881, %v877
          %v1034 = vpack.c.b16 %v882, %v878
          %v1035 = vpack.c.b16 %v883, %v879
          %v1036 = vpack.c.b16 %v888, %v884
          %v1037 = vpack.c.b16 %v889, %v885
          %v1038 = vpack.c.b16 %v890, %v886
          %v1039 = vpack.c.b16 %v891, %v887
          %v1040 = vpack.c.b16 %v896, %v892
          %v1041 = vpack.c.b16 %v897, %v893
          %v1042 = vpack.c.b16 %v898, %v894
          %v1043 = vpack.c.b16 %v899, %v895
          %v1044 = vpack.c.b16 %v904, %v900
          %v1045 = vpack.c.b16 %v905, %v901
          %v1046 = vpack.c.b16 %v906, %v902
          %v1047 = vpack.c.b16 %v907, %v903
          %v1048 = vpack.c.b16 %v912, %v908
          %v1049 = vpack.c.b16 %v913, %v909
          %v1050 = vpack.c.b16 %v914, %v910
          %v1051 = vpack.c.b16 %v915, %v911
          %v1052 = vpack.c.b16 %v920, %v916
          %v1053 = vpack.c.b16 %v921, %v917
          %v1054 = vpack.c.b16 %v922, %v918
          %v1055 = vpack.c.b16 %v923, %v919
          %v1056 = vpack.c.b16 %v928, %v924
          %v1057 = vpack.c.b16 %v929, %v925
          %v1058 = vpack.c.b16 %v930, %v926
          %v1059 = vpack.c.b16 %v931, %v927
          %1188 = vmatprep.subr.bf16.mxu0 %v933
          %1189 = vmatpush1.bf16.msra.mxu0 %v932
          %1190 = vmatprep.subr.bf16.mxu0 %v937
          %1191 = vmatpush1.bf16.msra.mxu0 %v936
          %1192 = vmatprep.subr.bf16.mxu0 %v941
          %1193 = vmatpush1.bf16.msra.mxu0 %v940
          %1194 = vmatprep.subr.bf16.mxu0 %v945
          %1195 = vmatpush1.bf16.msra.mxu0 %v944
          %1196 = vmatprep.subr.bf16.mxu0 %v949
          %1197 = vmatpush1.bf16.msra.mxu0 %v948
          %1198 = vmatprep.subr.bf16.mxu0 %v953
          %1199 = vmatpush1.bf16.msra.mxu0 %v952
          %1200 = vmatprep.subr.bf16.mxu0 %v957
          %1201 = vmatpush1.bf16.msra.mxu0 %v956
          %1202 = vmatprep.subr.bf16.mxu0 %v961
          %1203 = vmatpush1.bf16.msra.mxu0 %v960
          %1204 = vmatprep.subr.bf16.mxu0 %v965
          %1205 = vmatpush1.bf16.msra.mxu0 %v964
          %1206 = vmatprep.subr.bf16.mxu0 %v969
          %1207 = vmatpush1.bf16.msra.mxu0 %v968
          %1208 = vmatprep.subr.bf16.mxu0 %v973
          %1209 = vmatpush1.bf16.msra.mxu0 %v972
          %1210 = vmatprep.subr.bf16.mxu0 %v977
          %1211 = vmatpush1.bf16.msra.mxu0 %v976
          %1212 = vmatprep.subr.bf16.mxu0 %v981
          %1213 = vmatpush1.bf16.msra.mxu0 %v980
          %1214 = vmatprep.subr.bf16.mxu0 %v985
          %1215 = vmatpush1.bf16.msra.mxu0 %v984
          %1216 = vmatprep.subr.bf16.mxu0 %v989
          %1217 = vmatpush1.bf16.msra.mxu0 %v988
          %1218 = vmatprep.subr.bf16.mxu0 %v993
          %1219 = vmatpush1.bf16.msra.mxu0 %v992
          %1220 = vmatprep.mubr.bf16.mxu0 %v417
          %1221 = vmatmul.mubr.bf16.gmra.mrb[0].mxu0 %v416
          %v1222 = vpop.f32.mrb[0].mxu0
          %v1223 = vadd.f32 0.0, %v1222
          %v1224 = vpop.f32.mrb[0].mxu0
          %v1225 = vadd.f32 0.0, %v1224
          %v1226 = vpop.f32.mrb[0].mxu0
          %v1227 = vpop.f32.mrb[0].mxu0
          %1228 = vdwg.mxu0
          %1229 = vmatprep.subr.bf16.mxu0 %v997
          %1230 = vmatpush1.bf16.msra.mxu0 %v996
          %1231 = vmatprep.subr.bf16.mxu0 %v1001
          %1232 = vmatpush1.bf16.msra.mxu0 %v1000
          %1233 = vmatprep.subr.bf16.mxu0 %v1005
          %1234 = vmatpush1.bf16.msra.mxu0 %v1004
          %1235 = vmatprep.subr.bf16.mxu0 %v1009
          %1236 = vmatpush1.bf16.msra.mxu0 %v1008
          %1237 = vmatprep.subr.bf16.mxu0 %v1013
          %1238 = vmatpush1.bf16.msra.mxu0 %v1012
          %1239 = vmatprep.subr.bf16.mxu0 %v1017
          %1240 = vmatpush1.bf16.msra.mxu0 %v1016
          %1241 = vmatprep.subr.bf16.mxu0 %v1021
          %1242 = vmatpush1.bf16.msra.mxu0 %v1020
          %1243 = vmatprep.subr.bf16.mxu0 %v1025
          %1244 = vmatpush1.bf16.msra.mxu0 %v1024
          %1245 = vmatprep.subr.bf16.mxu0 %v1029
          %1246 = vmatpush1.bf16.msra.mxu0 %v1028
          %1247 = vmatprep.subr.bf16.mxu0 %v1033
          %1248 = vmatpush1.bf16.msra.mxu0 %v1032
          %1249 = vmatprep.subr.bf16.mxu0 %v1037
          %1250 = vmatpush1.bf16.msra.mxu0 %v1036
          %1251 = vmatprep.subr.bf16.mxu0 %v1041
          %1252 = vmatpush1.bf16.msra.mxu0 %v1040
          %1253 = vmatprep.subr.bf16.mxu0 %v1045
          %1254 = vmatpush1.bf16.msra.mxu0 %v1044
          %1255 = vmatprep.subr.bf16.mxu0 %v1049
          %1256 = vmatpush1.bf16.msra.mxu0 %v1048
          %1257 = vmatprep.subr.bf16.mxu0 %v1053
          %1258 = vmatpush1.bf16.msra.mxu0 %v1052
          %1259 = vmatprep.subr.bf16.mxu0 %v1057
          %1260 = vmatpush1.bf16.msra.mxu0 %v1056
          %1261 = vmatprep.mubr.bf16.mxu0 %v419
          %1262 = vmatmul.mubr.bf16.gmra.mrb[0].mxu0 %v418
          %v1263 = vpop.f32.mrb[0].mxu0
          %v1264 = vadd.f32 %v1223, %v1263
          %v1265 = vpop.f32.mrb[0].mxu0
          %v1266 = vadd.f32 %v1225, %v1265
          %v1267 = vpop.f32.mrb[0].mxu0
          %v1268 = vpop.f32.mrb[0].mxu0
          %1269 = vdwg.mxu0
          %1270 = vmatprep.subr.bf16.mxu0 %v935
          %1271 = vmatpush1.bf16.msra.mxu0 %v934
          %1272 = vmatprep.subr.bf16.mxu0 %v939
          %1273 = vmatpush1.bf16.msra.mxu0 %v938
          %1274 = vmatprep.subr.bf16.mxu0 %v943
          %1275 = vmatpush1.bf16.msra.mxu0 %v942
          %1276 = vmatprep.subr.bf16.mxu0 %v947
          %1277 = vmatpush1.bf16.msra.mxu0 %v946
          %1278 = vmatprep.subr.bf16.mxu0 %v951
          %1279 = vmatpush1.bf16.msra.mxu0 %v950
          %1280 = vmatprep.subr.bf16.mxu0 %v955
          %1281 = vmatpush1.bf16.msra.mxu0 %v954
          %1282 = vmatprep.subr.bf16.mxu0 %v959
          %1283 = vmatpush1.bf16.msra.mxu0 %v958
          %1284 = vmatprep.subr.bf16.mxu0 %v963
          %1285 = vmatpush1.bf16.msra.mxu0 %v962
          %1286 = vmatprep.subr.bf16.mxu0 %v967
          %1287 = vmatpush1.bf16.msra.mxu0 %v966
          %1288 = vmatprep.subr.bf16.mxu0 %v971
          %1289 = vmatpush1.bf16.msra.mxu0 %v970
          %1290 = vmatprep.subr.bf16.mxu0 %v975
          %1291 = vmatpush1.bf16.msra.mxu0 %v974
          %1292 = vmatprep.subr.bf16.mxu0 %v979
          %1293 = vmatpush1.bf16.msra.mxu0 %v978
          %1294 = vmatprep.subr.bf16.mxu0 %v983
          %1295 = vmatpush1.bf16.msra.mxu0 %v982
          %1296 = vmatprep.subr.bf16.mxu0 %v987
          %1297 = vmatpush1.bf16.msra.mxu0 %v986
          %1298 = vmatprep.subr.bf16.mxu0 %v991
          %1299 = vmatpush1.bf16.msra.mxu0 %v990
          %1300 = vmatprep.subr.bf16.mxu0 %v995
          %1301 = vmatpush1.bf16.msra.mxu0 %v994
          %1302 = vmatprep.mubr.bf16.mxu0 %v417
          %1303 = vmatmul.mubr.bf16.gmra.mrb[0].mxu0 %v416
          %v1304 = vpop.f32.mrb[0].mxu0
          %v1305 = vadd.f32 0.0, %v1304
          %v1306 = vpop.f32.mrb[0].mxu0
          %v1307 = vadd.f32 0.0, %v1306
          %v1308 = vpop.f32.mrb[0].mxu0
          %v1309 = vpop.f32.mrb[0].mxu0
          %1310 = vdwg.mxu0
          %1311 = vmatprep.subr.bf16.mxu0 %v999
          %1312 = vmatpush1.bf16.msra.mxu0 %v998
          %1313 = vmatprep.subr.bf16.mxu0 %v1003
          %1314 = vmatpush1.bf16.msra.mxu0 %v1002
          %1315 = vmatprep.subr.bf16.mxu0 %v1007
          %1316 = vmatpush1.bf16.msra.mxu0 %v1006
          %1317 = vmatprep.subr.bf16.mxu0 %v1011
          %1318 = vmatpush1.bf16.msra.mxu0 %v1010
          %1319 = vmatprep.subr.bf16.mxu0 %v1015
          %1320 = vmatpush1.bf16.msra.mxu0 %v1014
          %1321 = vmatprep.subr.bf16.mxu0 %v1019
          %1322 = vmatpush1.bf16.msra.mxu0 %v1018
          %1323 = vmatprep.subr.bf16.mxu0 %v1023
          %1324 = vmatpush1.bf16.msra.mxu0 %v1022
          %1325 = vmatprep.subr.bf16.mxu0 %v1027
          %1326 = vmatpush1.bf16.msra.mxu0 %v1026
          %1327 = vmatprep.subr.bf16.mxu0 %v1031
          %1328 = vmatpush1.bf16.msra.mxu0 %v1030
          %1329 = vmatprep.subr.bf16.mxu0 %v1035
          %1330 = vmatpush1.bf16.msra.mxu0 %v1034
          %1331 = vmatprep.subr.bf16.mxu0 %v1039
          %1332 = vmatpush1.bf16.msra.mxu0 %v1038
          %1333 = vmatprep.subr.bf16.mxu0 %v1043
          %1334 = vmatpush1.bf16.msra.mxu0 %v1042
          %1335 = vmatprep.subr.bf16.mxu0 %v1047
          %1336 = vmatpush1.bf16.msra.mxu0 %v1046
          %1337 = vmatprep.subr.bf16.mxu0 %v1051
          %1338 = vmatpush1.bf16.msra.mxu0 %v1050
          %1339 = vmatprep.subr.bf16.mxu0 %v1055
          %1340 = vmatpush1.bf16.msra.mxu0 %v1054
          %1341 = vmatprep.subr.bf16.mxu0 %v1059
          %1342 = vmatpush1.bf16.msra.mxu0 %v1058
          %1343 = vmatprep.mubr.bf16.mxu0 %v419
          %1344 = vmatmul.mubr.bf16.gmra.mrb[0].mxu0 %v418
          %v1345 = vpop.f32.mrb[0].mxu0
          %v1346 = vadd.f32 %v1305, %v1345
          %v1347 = vpop.f32.mrb[0].mxu0
          %v1348 = vadd.f32 %v1307, %v1347
          %v1349 = vpop.f32.mrb[0].mxu0
          %v1350 = vpop.f32.mrb[0].mxu0
          %1351 = vdwg.mxu0
          %v1356 = vcombine.low %v1264, %v1266
          %v1357 = vcombine.low %v1346, %v1348
          %1360 = vst [vmem:[%s218] sm:$0xff] %v1356
          %1361 = vst [vmem:[%s218 + $0x8] sm:$0xff] %v1357
        $region44: #{tpu_custom_call.1} parent=27 // pred_fallthru
          _
        %s1362 = sand.u32 %s96, 1
        %s1363 = scalar_lea.sflag [#allocation5], %s1362
        %s1364 = sand.u32 %s96, 1
        %s1365 = smul.addr %s1364, 16
        %s1366 = scalar_lea.vmem [#allocation8], %s1365
        // Predicated region
        $region45: #{tpu_custom_call.1} parent=27 // pred_check
          %p1367 = pneg %p106
        $region46: #{tpu_custom_call.1} parent=27 // pred_check_branch
          %1369 = sbr.rel (%p1367) target = $region48
        $region47: #{tpu_custom_call.1} parent=27 // pred_region
          %s1371 = ssub.s32 256, 256
          %1372 = vsyncadd %s1363, %s1371
          %s1373 = smul.addr %s26, 4
          %s1374 = smul.addr %s1373, 64
          %s1375 = scalar_lea.hbm %s2, %s1374
          %s1377 = sshll.u32 %s1366, 4
          %s1378 = int_to_ptr.vmem [resolvable:$true] %s1377
          %1380 = dma.vmem_to_hbm [thread:$0]  %s1378, 256, %s1375, %s1363
        $region48: #{tpu_custom_call.1} parent=27 // pred_fallthru
          _
      $region28: #{tpu_custom_call.1} parent=5 // pred_fallthru
        _
      %p1381 = scmp.le.s32.totalorder 2, %s17
      // Predicated region
      $region49: #{tpu_custom_call.1} parent=5 // pred_check
        %p1382 = pneg %p1381
      $region50: #{tpu_custom_call.1} parent=5 // pred_check_branch
        %1384 = sbr.rel (%p1382) target = $region52
      $region51: #{tpu_custom_call.1} parent=5 // pred_region
        %s1385 = ssub.s32 %s17, 2
        // Predicated region
        $region53: #{tpu_custom_call.1} parent=51 // pred_check
          %p1386 = pneg %p112
        $region54: #{tpu_custom_call.1} parent=51 // pred_check_branch
          %1388 = sbr.rel (%p1386) target = $region56
        $region55: #{tpu_custom_call.1} parent=51 // pred_region
          %s1389 = sand.u32 %s97, 1
          %s1390 = scalar_lea.sflag [#allocation5], %s1389
          %s1391 = sand.u32 %s97, 1
          %s1392 = smul.addr %s1391, 16
          %s1393 = scalar_lea.vmem [#allocation8], %s1392
          %1394 = dma.done %s1390, 256
        $region56: #{tpu_custom_call.1} parent=51 // pred_fallthru
          _
      $region52: #{tpu_custom_call.1} parent=5 // pred_fallthru
        _
    $region6: #{tpu_custom_call.1} parent=1 // loop_footer
      %s21 = sadd.s32 1, %s17
    $region7: #{tpu_custom_call.1} parent=1 // loop_footer_branch
      %16 = sbr.rel target = $region3
    $region8: #{tpu_custom_call.1} parent=1 // loop_exit
      _
    %1395 = vsyncpa [#allocation4], 1
    %s1396 = scalar_lea.sflag [#allocation4], 1
    %1397 = vsyncpa %s1396, 1
    %1398 = vsyncpa [#allocation7], 1
    %s1399 = scalar_lea.sflag [#allocation7], 1
    %1400 = vsyncpa %s1399, 1
    %1401 = vsyncpa [#allocation5], 1
    %s1402 = scalar_lea.sflag [#allocation5], 1
    %1403 = vsyncpa %s1402, 1

</llo_original>
